<compile_context>
chip_gen: v6e
topology: v6e:2x2x1
jax: 0.10.0
libtpu: 0.0.40
codegen_flags: <defaults>
</compile_context>

<pallas_src>
import functools
import math

import numpy as np

import jax
import jax.numpy as jnp
from jax import lax
from jax.experimental import pallas as pl
from jax.experimental.pallas import tpu as pltpu


_LANE = 128
_SUBLANE = 8
_MiB = 1 << 20
_N_GATHER_SEMS = 8


# ------------------------------ small helpers --------------------------------

def _ceil_to(x, m):
    return ((x + m - 1) // m) * m


def _next_pow2(x):
    return 1 << (max(int(x), 1) - 1).bit_length()


def _vmem_capacity_bytes():
    """Physical VMEM if queryable; conservative (v7x-sized) default otherwise."""
    try:
        info = pltpu.get_tpu_info()
        for attr in ("vmem_capacity_bytes", "vmem_size_bytes", "vmem_bytes"):
            cap = getattr(info, attr, None)
            if cap:
                return int(cap)
    except Exception:
        pass
    return 64 * _MiB


def _pick_tile(dim_padded, vmem_cap):
    # Bigger tiles on 128 MiB parts (v5e/v6e); conservative on 64 MiB (v7x).
    cands = (1024, 512, 256, 128) if vmem_cap >= 100 * _MiB else (512, 256, 128)
    for c in cands:
        if dim_padded % c == 0:
            return c
    return dim_padded


def _m_tiling(m, tm_cap):
    """Bucketed row padding + row-tile size (bounded recompiles, MXU-friendly).

    Minimum bucket is 16 (bf16 sublane packing); the 64 bucket is skipped in
    favour of 128 so the 256-wide MXU isn't fed low-occupancy tiles.
    """
    m = max(int(m), 1)
    if m <= 16:
        return 16, 16
    if m <= 32:
        return 32, 32
    if m <= 128:
        return 128, 128
    mp = _next_pow2(m)
    if mp <= tm_cap:
        return mp, mp
    return _ceil_to(m, tm_cap), tm_cap


def _pad2(a, rows, cols, dtype):
    r, c = a.shape
    return jnp.pad(a.astype(dtype), ((0, rows - r), (0, cols - c)))


def _head_vmem_bytes(tm, tn, tk):
    return (2 * tm * tk * 2       # x tiles (bf16, double buffered)
            + 2 * tk * tn * 2     # W tiles (bf16, double buffered)
            + 2 * tn * 4          # bias tiles
            + 2 * tm * tn * 4     # out tiles (f32, double buffered)
            + tm * tn * 4)        # f32 accumulator scratch


def _tail_vmem_bytes(tm, tc, Kp, Hp):
    return (tm * Kp * 4           # gathered rows (f32 scratch)
            + tm * Hp * 2         # h scratch (bf16)
            + 2 * Kp * Hp * 2     # W1 (worst case: double buffered)
            + 2 * Hp * tc * 2     # W2 tiles
            + 2 * tm * tc * 4)    # out tiles (f32)


# ------------------------------- Pallas kernels -------------------------------

def _head_kernel(x_ref, wt_ref, b_ref, o_ref, acc_ref):
    # y = x @ W.T + b ; W pre-transposed to (K, N); bf16 inputs, f32 accumulate.
    k = pl.program_id(2)

    @pl.when(k == 0)
    def _():
        # Seed the accumulator with the broadcast bias (drops the finalize add).
        acc_ref[...] = jnp.broadcast_to(b_ref[...], acc_ref.shape)

    acc_ref[...] += jnp.dot(x_ref[...], wt_ref[...],
                            preferred_element_type=jnp.float32)

    @pl.when(k == pl.num_programs(2) - 1)
    def _():
        o_ref[...] = acc_ref[...].astype(o_ref.dtype)


def _tail_fused_kernel(ids_ref, x_hbm, w1t_ref, w2t_ref, o_ref,
                       xbuf_ref, h_ref, sems):
    # Fused row-gather + o = (x_sel @ W1.T) @ W2.T for one cluster.
    #
    # INVARIANT: xbuf/h are built on the C-index==0 step of every M-tile and
    # reused for the remaining C steps, so the C grid axis MUST stay
    # "arbitrary" (sequential on one core). Never mark it "parallel".
    m_i = pl.program_id(0)
    c_i = pl.program_id(1)
    tm = xbuf_ref.shape[0]

    @pl.when(c_i == 0)
    def _():
        base = m_i * tm

        # Gather the tm selected rows straight from HBM (scalar-prefetched ids)
        # with overlapping single-row DMAs: removes the jnp.take HBM pass.
        def _issue(r, carry):
            row = ids_ref[base + r]
            pltpu.make_async_copy(
                x_hbm.at[pl.ds(row, 1)],
                xbuf_ref.at[pl.ds(r, 1)],
                sems.at[r & (_N_GATHER_SEMS - 1)],
            ).start()
            return carry

        lax.fori_loop(0, tm, _issue, 0)

        def _wait(r, carry):
            pltpu.make_async_copy(
                x_hbm.at[pl.ds(0, 1)],
                xbuf_ref.at[pl.ds(r, 1)],
                sems.at[r & (_N_GATHER_SEMS - 1)],
            ).wait()
            return carry

        lax.fori_loop(0, tm, _wait, 0)

        # h kept as bf16 scratch (halves footprint, no per-C-step cast).
        h_ref[...] = jnp.dot(xbuf_ref[...].astype(jnp.bfloat16), w1t_ref[...],
                             preferred_element_type=jnp.float32
                             ).astype(jnp.bfloat16)

    o_ref[...] = jnp.dot(h_ref[...], w2t_ref[...],
                         preferred_element_type=jnp.float32)


def _tail_copy_kernel(x_ref, w1t_ref, w2t_ref, o_ref, h_ref):
    # Fallback tail (pre-gathered x_sel): same math, no in-kernel gather.
    @pl.when(pl.program_id(1) == 0)
    def _():
        h_ref[...] = jnp.dot(x_ref[...], w1t_ref[...],
                             preferred_element_type=jnp.float32
                             ).astype(jnp.bfloat16)

    o_ref[...] = jnp.dot(h_ref[...], w2t_ref[...],
                         preferred_element_type=jnp.float32)


# --------------------------- pallas_call builders -----------------------------
# lru_cache keeps one callable per shape/tile signature so jax's dispatch cache
# can hit (bounds recompiles across forward calls).

@functools.lru_cache(maxsize=None)
def _build_head_call(Mp, Np, Kp, tm, tn, tk, vmem_limit):
    grid = (Mp // tm, Np // tn, Kp // tk)
    return pl.pallas_call(
        _head_kernel,
        out_shape=jax.ShapeDtypeStruct((Mp, Np), jnp.float32),
        grid_spec=pltpu.PrefetchScalarGridSpec(
            num_scalar_prefetch=0,
            grid=grid,
            in_specs=[
                pl.BlockSpec((tm, tk), lambda i, j, k: (i, k)),
                pl.BlockSpec((tk, tn), lambda i, j, k: (k, j)),
                pl.BlockSpec((1, tn), lambda i, j, k: (0, j)),
            ],
            out_specs=pl.BlockSpec((tm, tn), lambda i, j, k: (i, j)),
            scratch_shapes=[pltpu.VMEM((tm, tn), jnp.float32)],
        ),
        compiler_params=pltpu.CompilerParams(
            dimension_semantics=("parallel", "parallel", "arbitrary"),
            vmem_limit_bytes=vmem_limit),
    )


@functools.lru_cache(maxsize=None)
def _build_tail_fused_call(Mp, Nx, Kp, Hp, Cp, tm, tc, single_buffer_w1,
                           vmem_limit):
    grid = (Mp // tm, Cp // tc)
    if single_buffer_w1:
        # W1 block never changes across the grid -> single-buffer it
        # (saves Kp*Hp*2 bytes of VMEM at zero perf cost).
        w1_spec = pl.BlockSpec((Kp, Hp), lambda i, j, ids: (0, 0),
                               pipeline_mode=pl.Buffered(1))
    else:
        w1_spec = pl.BlockSpec((Kp, Hp), lambda i, j, ids: (0, 0))
    return pl.pallas_call(
        _tail_fused_kernel,
        out_shape=jax.ShapeDtypeStruct((Mp, Cp), jnp.float32),
        grid_spec=pltpu.PrefetchScalarGridSpec(
            num_scalar_prefetch=1,                  # ids -> SMEM
            grid=grid,
            in_specs=[
                pl.BlockSpec(memory_space=pl.ANY),  # x stays in HBM; DMA-gather
                w1_spec,
                pl.BlockSpec((Hp, tc), lambda i, j, ids: (0, j)),
            ],
            out_specs=pl.BlockSpec((tm, tc), lambda i, j, ids: (i, j)),
            scratch_shapes=[
                pltpu.VMEM((tm, Kp), jnp.float32),        # gathered rows
                pltpu.VMEM((tm, Hp), jnp.bfloat16),       # h (bf16 scratch)
                pltpu.SemaphoreType.DMA((_N_GATHER_SEMS,)),
            ],
        ),
        compiler_params=pltpu.CompilerParams(
            dimension_semantics=("parallel", "arbitrary"),
            vmem_limit_bytes=vmem_limit),
    )


@functools.lru_cache(maxsize=None)
def _build_tail_copy_call(Mp, Kp, Hp, Cp, tm, tc, vmem_limit):
    grid = (Mp // tm, Cp // tc)
    return pl.pallas_call(
        _tail_copy_kernel,
        out_shape=jax.ShapeDtypeStruct((Mp, Cp), jnp.float32),
        grid_spec=pltpu.PrefetchScalarGridSpec(
            num_scalar_prefetch=0,
            grid=grid,
            in_specs=[
                pl.BlockSpec((tm, Kp), lambda i, j: (i, 0)),
                pl.BlockSpec((Kp, Hp), lambda i, j: (0, 0)),
                pl.BlockSpec((Hp, tc), lambda i, j: (0, j)),
            ],
            out_specs=pl.BlockSpec((tm, tc), lambda i, j: (i, j)),
            scratch_shapes=[pltpu.VMEM((tm, Hp), jnp.bfloat16)],
        ),
        compiler_params=pltpu.CompilerParams(
            dimension_semantics=("parallel", "arbitrary"),
            vmem_limit_bytes=vmem_limit),
    )


# ------------------------- Module-equivalent wrapper --------------------------

class AdaptiveSoftmaxPallas:
    """Forward pass of the PyTorch AdaptiveSoftmax module on TPU via Pallas."""

    def __init__(self, input_size, cutoff, key):
        self.input_size = input_size
        self.cutoff = list(cutoff)
        self.output_size = cutoff[0] + len(cutoff) - 1

        def xavier(key, shape):
            fan_out, fan_in = shape
            std = math.sqrt(2.0 / (fan_in + fan_out))
            return std * jax.random.normal(key, shape, dtype=jnp.float32)

        keys = jax.random.split(key, 1 + 2 * (len(cutoff) - 1))
        # head: Linear(input_size, output_size) with bias
        self.head_w = xavier(keys[0], (self.output_size, input_size))
        self.head_b = jnp.zeros((self.output_size,), dtype=jnp.float32)
        # tails: Linear(D, D // 4**i, bias=False) -> Linear(., cutoff[i]-cutoff[i-1], bias=False)
        self.tail = []
        for i in range(1, len(cutoff)):
            hdim = input_size // (4 ** i)
            w1 = xavier(keys[2 * i - 1], (hdim, input_size))
            w2 = xavier(keys[2 * i], (cutoff[i] - cutoff[i - 1], hdim))
            self.tail.append((w1, w2))

        # ---- per-chip VMEM budget / explicit scoped limit -------------------
        self._vmem_cap = _vmem_capacity_bytes()
        self._vmem_limit = int(min(max(self._vmem_cap - 8 * _MiB, 16 * _MiB),
                                   120 * _MiB))
        self._head_tm_cap = 512 if self._vmem_cap >= 100 * _MiB else 256
        self._tail_tm_cap = 256

        # ---- pre-transposed, lane-padded, bf16 weights (built ONCE) ---------
        D, O = input_size, self.output_size
        self.D_pad = _ceil_to(D, _LANE)
        self.O_pad = _ceil_to(O, _LANE)
        self.head_wt_p = _pad2(self.head_w.T, self.D_pad, self.O_pad, jnp.bfloat16)
        self.head_b_p = _pad2(self.head_b.reshape(1, O), 1, self.O_pad, jnp.float32)

        self.tail_p = []
        for (w1, w2) in self.tail:
            H, C = w1.shape[0], w2.shape[0]
            H_pad = _ceil_to(H, _LANE)
            C_pad = _ceil_to(C, _LANE)
            w1t_p = _pad2(w1.T, self.D_pad, H_pad, jnp.bfloat16)
            w2t_p = _pad2(w2.T, H_pad, C_pad, jnp.bfloat16)
            self.tail_p.append((w1t_p, w2t_p, C))

        # Tail execution mode; degraded (at most twice, process-wide) if this
        # jax/TPU combo rejects the fused-gather kernel or Buffered(1).
        self._tail_mode = "fused_b1"   # -> "fused" -> "copy"
        self.id = []

    # ------------------------------ tiling --------------------------------

    def _head_tiles(self, tm):
        tn = _pick_tile(self.O_pad, self._vmem_cap)
        tk = _pick_tile(self.D_pad, self._vmem_cap)
        while _head_vmem_bytes(tm, tn, tk) > self._vmem_limit:
            if tk > _LANE:
                tk //= 2
            elif tn > _LANE:
                tn //= 2
            elif tm > 16:
                tm //= 2
            else:
                break
        return tm, tn, tk

    def _tail_tiles(self, m, Kp, Hp, Cp):
        Mp, tm = _m_tiling(m, self._tail_tm_cap)
        tc = _pick_tile(Cp, self._vmem_cap)
        while tc > _LANE and _tail_vmem_bytes(tm, tc, Kp, Hp) > self._vmem_limit:
            tc //= 2
        return Mp, tm, tc

    # ------------------------------ API ------------------------------------

    def set_target(self, target):
        # target: 1-D integer array (concrete). Mirrors the PyTorch logic.
        target = np.asarray(target)
        self.id = []
        for i in range(len(self.cutoff) - 1):
            mask = (target >= self.cutoff[i]) & (target < self.cutoff[i + 1])
            if mask.sum() > 0:
                self.id.append(np.nonzero(mask)[0].astype(np.int32))
            else:
                self.id.append(None)

    def forward(self, x):
        # x: (batch, input_size) f32
        N, D = x.shape

        # One bf16 cast + lane-pad of the activations (head + fallback tails).
        x_bf = jnp.pad(x.astype(jnp.bfloat16), ((0, 0), (0, self.D_pad - D)))

        # ----- head: y = x @ Wh.T + bh over every row ------------------------
        Mp, tm = _m_tiling(N, self._head_tm_cap)
        tm, tn, tk = self._head_tiles(tm)
        xh = jnp.pad(x_bf, ((0, Mp - N), (0, 0)))
        head_call = _build_head_call(Mp, self.O_pad, self.D_pad, tm, tn, tk,
                                     self._vmem_limit)
        head_out = head_call(xh, self.head_wt_p, self.head_b_p)
        output = [head_out[:N, :self.output_size]]

        # ----- tails: per-cluster (x_sel @ W1.T) @ W2.T -----------------------
        x_gather = None   # f32 lane-padded activations for the fused DMA gather
        for i in range(len(self.id)):
            ids = self.id[i]
            if ids is None:
                output.append(None)
                continue
            m = int(ids.shape[0])
            w1t_p, w2t_p, C = self.tail_p[i]
            Hp = w1t_p.shape[1]
            Cp = w2t_p.shape[1]
            Mp_t, tm_t, tc = self._tail_tiles(m, self.D_pad, Hp, Cp)
            ids_full = np.zeros((Mp_t,), dtype=np.int32)
            ids_full[:m] = np.asarray(ids, dtype=np.int32)   # pad with row 0
            ids_dev = jnp.asarray(ids_full)

            out_full = None
            while out_full is None:
                try:
                    if self._tail_mode in ("fused_b1", "fused"):
                        if x_gather is None:
                            # f32 rows: 32-bit granularity keeps the per-row DMA
                            # scatter into VMEM layout-friendly.
                            N8 = _ceil_to(max(N, _SUBLANE), _SUBLANE)
                            x_gather = jnp.pad(
                                x, ((0, N8 - N), (0, self.D_pad - D)))
                        call = _build_tail_fused_call(
                            Mp_t, x_gather.shape[0], self.D_pad, Hp, Cp,
                            tm_t, tc, self._tail_mode == "fused_b1",
                            self._vmem_limit)
                        out_full = jax.block_until_ready(
                            call(ids_dev, x_gather, w1t_p, w2t_p))
                    else:
                        # Fallback: materialized gather (one extra HBM pass).
                        x_sel = jnp.take(x_bf, ids_dev, axis=0)
                        call = _build_tail_copy_call(
                            Mp_t, self.D_pad, Hp, Cp, tm_t, tc,
                            self._vmem_limit)
                        out_full = jax.block_until_ready(
                            call(x_sel, w1t_p, w2t_p))
                except Exception:
                    # Degrade gracefully: fused+Buffered(1) -> fused -> copy.
                    if self._tail_mode == "fused_b1":
                        self._tail_mode = "fused"
                    elif self._tail_mode == "fused":
                        self._tail_mode = "copy"
                    else:
                        raise
            output.append(out_full[:m, :C])
        return output


# ------------------------------------ demo ------------------------------------

if __name__ == "__main__":
    key = jax.random.PRNGKey(0)
    k_param, k_x, k_t = jax.random.split(key, 3)

    input_size = 32
    cutoff = [8, 16, 32]          # vocab of 32 tokens: 8 head tokens + 2 cluster slots
    batch = 16

    model = AdaptiveSoftmaxPallas(input_size, cutoff, k_param)

    x = jax.random.normal(k_x, (batch, input_size), dtype=jnp.float32)
    target = jax.random.randint(k_t, (batch,), 0, cutoff[-1])

    model.set_target(np.asarray(target))
    outs = model.forward(x)

    # Reference check in plain JAX: same bf16 rounding of inputs/weights,
    # f32 accumulation -> should match the MXU result closely.
    xb = x.astype(jnp.bfloat16).astype(jnp.float32)
    hw = model.head_w.astype(jnp.bfloat16).astype(jnp.float32)
    ref_head = xb @ hw.T + model.head_b
    np.testing.assert_allclose(np.asarray(outs[0]), np.asarray(ref_head),
                               rtol=1e-2, atol=1e-2)

    for i in range(len(model.id)):
        o = outs[i + 1]
        if o is None:
            continue
        w1, w2 = model.tail[i]
        w1b = w1.astype(jnp.bfloat16).astype(jnp.float32)
        w2b = w2.astype(jnp.bfloat16).astype(jnp.float32)
        x_sel = xb[np.asarray(model.id[i])]
        h_ref = (x_sel @ w1b.T).astype(jnp.bfloat16).astype(jnp.float32)
        ref = h_ref @ w2b.T
        np.testing.assert_allclose(np.asarray(o), np.asarray(ref),
                                   rtol=1e-2, atol=1e-2)

    for o in outs:
        if o is not None:
            jax.block_until_ready(o)

    print("KERNEL_OK")
</pallas_src>

<mosaic_0001>
module attributes {stable_mosaic.version = 11 : i64} {
  func.func @_head_kernel(%arg0: i32, %arg1: i32, %arg2: i32, %arg3: memref<16x128xbf16, #tpu.memory_space<vmem>>, %arg4: memref<128x128xbf16, #tpu.memory_space<vmem>>, %arg5: memref<1x128xf32, #tpu.memory_space<vmem>>, %arg6: memref<16x128xf32, #tpu.memory_space<vmem>>, %arg7: memref<16x128xf32, #tpu.memory_space<vmem>>) attributes {dimension_semantics = [#tpu.dimension_semantics<parallel>, #tpu.dimension_semantics<parallel>, #tpu.dimension_semantics<arbitrary>], iteration_bounds = array<i64: 1, 1, 1>, scalar_prefetch = 0 : i64, scratch_operands = 1 : i64, tpu.core_type = #tpu.core_type<tc>, window_params = [{transform_indices = @transform_0, window_bounds = array<i64: 16, 128>}, {transform_indices = @transform_1, window_bounds = array<i64: 128, 128>}, {transform_indices = @transform_2, window_bounds = array<i64: 1, 128>}, {transform_indices = @transform_3, window_bounds = array<i64: 16, 128>}]} {
    %c0_i32 = arith.constant 0 : i32
    %0 = arith.cmpi eq, %arg2, %c0_i32 : i32
    %1 = arith.extui %0 : i1 to i32
    %c0_i32_0 = arith.constant 0 : i32
    %2 = arith.cmpi ne, %1, %c0_i32_0 : i32
    scf.if %2 {
      %c0_10 = arith.constant 0 : index
      %c0_11 = arith.constant 0 : index
      %12 = vector.load %arg5[%c0_10, %c0_11] : memref<1x128xf32, #tpu.memory_space<vmem>>, vector<1x128xf32>
      %13 = vector.shape_cast %12 : vector<1x128xf32> to vector<1x128xf32>
      %14 = vector.broadcast %13 : vector<1x128xf32> to vector<16x128xf32>
      %c0_12 = arith.constant 0 : index
      %c0_13 = arith.constant 0 : index
      %15 = vector.load %arg7[%c0_12, %c0_13] : memref<16x128xf32, #tpu.memory_space<vmem>>, vector<16x128xf32>
      tpu.vector_store %arg7[%c0_12, %c0_13], %14 {strides = array<i32>} : memref<16x128xf32, #tpu.memory_space<vmem>>, vector<16x128xf32>,
    } else {
    }
    %c0 = arith.constant 0 : index
    %c0_1 = arith.constant 0 : index
    %3 = vector.load %arg7[%c0, %c0_1] : memref<16x128xf32, #tpu.memory_space<vmem>>, vector<16x128xf32>
    %c0_2 = arith.constant 0 : index
    %c0_3 = arith.constant 0 : index
    %4 = vector.load %arg3[%c0_2, %c0_3] : memref<16x128xbf16, #tpu.memory_space<vmem>>, vector<16x128xbf16>
    %c0_4 = arith.constant 0 : index
    %c0_5 = arith.constant 0 : index
    %5 = vector.load %arg4[%c0_4, %c0_5] : memref<128x128xbf16, #tpu.memory_space<vmem>>, vector<128x128xbf16>
    %cst = arith.constant dense<0.000000e+00> : vector<16x128xf32>
    %6 = tpu.matmul %4, %5, %cst {dimension_numbers = #tpu.dot_dimension_numbers<[1], [0], [0], [1], [0, 0, 1, 1], [], []>} : vector<16x128xbf16>, vector<128x128xbf16>, vector<16x128xf32> -> vector<16x128xf32>
    %7 = arith.addf %3, %6 : vector<16x128xf32>
    %c0_6 = arith.constant 0 : index
    %c0_7 = arith.constant 0 : index
    %8 = vector.load %arg7[%c0_6, %c0_7] : memref<16x128xf32, #tpu.memory_space<vmem>>, vector<16x128xf32>
    tpu.vector_store %arg7[%c0_6, %c0_7], %7 {strides = array<i32>} : memref<16x128xf32, #tpu.memory_space<vmem>>, vector<16x128xf32>,
    %c0_i32_8 = arith.constant 0 : i32
    %9 = arith.cmpi eq, %arg2, %c0_i32_8 : i32
    %10 = arith.extui %9 : i1 to i32
    %c0_i32_9 = arith.constant 0 : i32
    %11 = arith.cmpi ne, %10, %c0_i32_9 : i32
    scf.if %11 {
      %c0_10 = arith.constant 0 : index
      %c0_11 = arith.constant 0 : index
      %12 = vector.load %arg7[%c0_10, %c0_11] : memref<16x128xf32, #tpu.memory_space<vmem>>, vector<16x128xf32>
      %c0_12 = arith.constant 0 : index
      %c0_13 = arith.constant 0 : index
      %13 = vector.load %arg6[%c0_12, %c0_13] : memref<16x128xf32, #tpu.memory_space<vmem>>, vector<16x128xf32>
      tpu.vector_store %arg6[%c0_12, %c0_13], %12 {strides = array<i32>} : memref<16x128xf32, #tpu.memory_space<vmem>>, vector<16x128xf32>,
    } else {
    }
    return
  }
  func.func @transform_0(%arg0: i32, %arg1: i32, %arg2: i32) -> (i32, i32) {
    %c0_i32 = arith.constant 0 : i32
    return %arg0, %arg2 : i32, i32
  }
  func.func @transform_1(%arg0: i32, %arg1: i32, %arg2: i32) -> (i32, i32) {
    %c0_i32 = arith.constant 0 : i32
    return %arg2, %arg1 : i32, i32
  }
  func.func @transform_2(%arg0: i32, %arg1: i32, %arg2: i32) -> (i32, i32) {
    %c0_i32 = arith.constant 0 : i32
    %c0_i32_0 = arith.constant 0 : i32
    return %c0_i32, %arg1 : i32, i32
  }
  func.func @transform_3(%arg0: i32, %arg1: i32, %arg2: i32) -> (i32, i32) {
    %c0_i32 = arith.constant 0 : i32
    return %arg0, %arg1 : i32, i32
  }
}

</mosaic_0001>

<llo_original>
// kernel: tpu_custom_call.1
$region0: #{tpu_custom_call.1}
  #allocation0 [shape = 'u32[]', space=smem, size = 0x4, offset = 0x4, fixed_abs, tag = 'smem constant byte address 0x4 - core index']
  #allocation1 [shape = 'u32[144,128]{1,0:T(1,128)}', space=vmem, size = 0x12000, scoped, tag = 'internal scratch']
  #allocation2 [shape = 'f32[16,128]{1,0:T(8,128)}', space=vmem, size = 0x2000, scoped, tag = 'scratch operand']
  %s0 = inlined_call_operand.hbm [shape: bf16[16,128], index: 0, kind: input, shape index: {}]
  %s1 = inlined_call_operand.hbm [shape: bf16[128,128], index: 1, kind: input, shape index: {}]
  %s2 = inlined_call_operand.vmem [shape: f32[1,128], index: 2, kind: input, shape index: {}]
  %s3 = inlined_call_operand.hbm [shape: f32[16,128], index: 3, kind: output, shape index: {}]
  %s4 = sld [smem:[#allocation0]]
  $region38: #{tpu_custom_call.1} parent=0
    _
  %s6 = ssub.s32 1, %s4
  %s7 = scalar_select 0, %s6, %s4
  $region1: #{tpu_custom_call.1} parent=0
    #allocation3 [shape = 'u8[4096]{0}', space=vmem, size = 0x1000, scoped, tag = 'input window, operand 0, single buffered']
    #allocation4 [shape = 's32[1]{0}', space=sflag, size = 0x4, scoped, tag = 'scoped memory for tpu_custom_call.1']
    #allocation5 [shape = 's32[1]{0}', space=sflag, size = 0x4, scoped, tag = 'scoped memory for tpu_custom_call.1']
    #allocation6 [shape = 'u8[32768]{0}', space=vmem, size = 0x8000, scoped, tag = 'input window, operand 1, single buffered']
    #allocation7 [shape = 's32[1]{0}', space=sflag, size = 0x4, scoped, tag = 'scoped memory for tpu_custom_call.1']
    #allocation8 [shape = 'u8[8192]{0}', space=vmem, size = 0x2000, scoped, tag = 'output window, operand 0, single buffered']
    %8 = vsyncpa [#allocation4], 0
    %9 = vsyncpa [#allocation7], 0
    %10 = vsyncpa [#allocation5], 0
    // Predicated region
    $region2: #{tpu_custom_call.1} parent=1 // pred_check
      _
    $region3: #{tpu_custom_call.1} parent=1 // pred_check_branch
      %12 = sbr.rel (0) target = $region5
    $region4: #{tpu_custom_call.1} parent=1 // pred_region
      %s14 = ssub.s32 128, 128
      %15 = vsyncadd [#allocation4], %s14
      %s16 = sshll.u32 [#allocation3], 4
      %s17 = int_to_ptr.vmem [resolvable:$true] %s16
      %22 = dma.hbm_to_vmem [thread:$0]  %s0, 128, %s17, [#allocation4], 64, 64, 4
    $region5: #{tpu_custom_call.1} parent=1 // pred_fallthru
      _
    // Predicated region
    $region6: #{tpu_custom_call.1} parent=1 // pred_check
      _
    $region7: #{tpu_custom_call.1} parent=1 // pred_check_branch
      %24 = sbr.rel (0) target = $region9
    $region8: #{tpu_custom_call.1} parent=1 // pred_region
      %s26 = ssub.s32 1024, 1024
      %27 = vsyncadd [#allocation7], %s26
      %s28 = sshll.u32 [#allocation6], 4
      %s29 = int_to_ptr.vmem [resolvable:$true] %s28
      %34 = dma.hbm_to_vmem [thread:$0]  %s1, 1024, %s29, [#allocation7], 64, 64, 4
    $region9: #{tpu_custom_call.1} parent=1 // pred_fallthru
      _
    // Predicated region
    $region10: #{tpu_custom_call.1} parent=1 // pred_check
      _
    $region11: #{tpu_custom_call.1} parent=1 // pred_check_branch
      %36 = sbr.rel (0) target = $region13
    $region12: #{tpu_custom_call.1} parent=1 // pred_region
      _
    $region13: #{tpu_custom_call.1} parent=1 // pred_fallthru
      _
    // Predicated region
    $region14: #{tpu_custom_call.1} parent=1 // pred_check
      _
    $region15: #{tpu_custom_call.1} parent=1 // pred_check_branch
      %38 = sbr.rel (0) target = $region17
    $region16: #{tpu_custom_call.1} parent=1 // pred_region
      %39 = dma.done [#allocation4], 128
    $region17: #{tpu_custom_call.1} parent=1 // pred_fallthru
      _
    // Predicated region
    $region18: #{tpu_custom_call.1} parent=1 // pred_check
      _
    $region19: #{tpu_custom_call.1} parent=1 // pred_check_branch
      %41 = sbr.rel (0) target = $region21
    $region20: #{tpu_custom_call.1} parent=1 // pred_region
      %42 = dma.done [#allocation7], 1024
    $region21: #{tpu_custom_call.1} parent=1 // pred_fallthru
      _
    %p44 = scmp.eq.s32.totalorder 0, 0
    // Predicated region
    $region22: #{tpu_custom_call.1} parent=1 // pred_check
      %p45 = pneg %p44
    $region23: #{tpu_custom_call.1} parent=1 // pred_check_branch
      %47 = sbr.rel (%p45) target = $region25
    $region24: #{tpu_custom_call.1} parent=1 // pred_region
      %v48 = vld [vmem:[%s2] sm:$0x1]
      %v50 = vlaneseq
      %v51 = vshrl.u32 %v50, 7
      %v52 = vsub.s32 0, %v51
      %v53 = vrot.slane %v48, %v52
      %55 = vst [vmem:[#allocation2] sm:$0xff] %v53
      %56 = vst [vmem:[#allocation2 + $0x8] sm:$0xff] %v53
    $region25: #{tpu_custom_call.1} parent=1 // pred_fallthru
      _
    %v57 = vld [vmem:[#allocation2] sm:$0xff]
    %v58 = vld [vmem:[#allocation2 + $0x8] sm:$0xff]
    %v59 = vld [vmem:[#allocation3] sm:$0xf]
    %v60 = vld [vmem:[#allocation3 + $0x4] sm:$0xf]
    %v61 = vld [vmem:[#allocation6] sm:$0xf]
    %v62 = vld [vmem:[#allocation6 + $0x4] sm:$0xf]
    %v63 = vld [vmem:[#allocation6 + $0x8] sm:$0xf]
    %v64 = vld [vmem:[#allocation6 + $0xc] sm:$0xf]
    %v65 = vld [vmem:[#allocation6 + $0x10] sm:$0xf]
    %v66 = vld [vmem:[#allocation6 + $0x14] sm:$0xf]
    %v67 = vld [vmem:[#allocation6 + $0x18] sm:$0xf]
    %v68 = vld [vmem:[#allocation6 + $0x1c] sm:$0xf]
    %v69 = vld [vmem:[#allocation6 + $0x20] sm:$0xf]
    %v70 = vld [vmem:[#allocation6 + $0x24] sm:$0xf]
    %v71 = vld [vmem:[#allocation6 + $0x28] sm:$0xf]
    %v72 = vld [vmem:[#allocation6 + $0x2c] sm:$0xf]
    %v73 = vld [vmem:[#allocation6 + $0x30] sm:$0xf]
    %v74 = vld [vmem:[#allocation6 + $0x34] sm:$0xf]
    %v75 = vld [vmem:[#allocation6 + $0x38] sm:$0xf]
    %v76 = vld [vmem:[#allocation6 + $0x3c] sm:$0xf]
    %v79 = vunpack.c.l.b16 %v59
    %v80 = vunpack.c.l.b16 %v60
    %v81 = vpack.c.b16 %v80, %v79
    %v99 = vunpack.c.l.b16 %v61
    %v100 = vunpack.c.l.b16 %v62
    %v101 = vunpack.c.l.b16 %v63
    %v102 = vunpack.c.l.b16 %v64
    %v103 = vunpack.c.l.b16 %v65
    %v104 = vunpack.c.l.b16 %v66
    %v105 = vunpack.c.l.b16 %v67
    %v106 = vunpack.c.l.b16 %v68
    %v107 = vunpack.c.l.b16 %v69
    %v108 = vunpack.c.l.b16 %v70
    %v109 = vunpack.c.l.b16 %v71
    %v110 = vunpack.c.l.b16 %v72
    %v111 = vunpack.c.l.b16 %v73
    %v112 = vunpack.c.l.b16 %v74
    %v113 = vunpack.c.l.b16 %v75
    %v114 = vunpack.c.l.b16 %v76
    %v115 = vpack.c.b16 %v100, %v99
    %v116 = vpack.c.b16 %v102, %v101
    %v117 = vpack.c.b16 %v104, %v103
    %v118 = vpack.c.b16 %v106, %v105
    %v119 = vpack.c.b16 %v108, %v107
    %v120 = vpack.c.b16 %v110, %v109
    %v121 = vpack.c.b16 %v112, %v111
    %v122 = vpack.c.b16 %v114, %v113
    %131 = vmatprep.subr.bf16.mxu0 0
    %132 = vmatpush1.bf16.msra.mxu0 %v122
    %133 = vmatprep.subr.bf16.mxu0 0
    %134 = vmatpush1.bf16.msra.mxu0 %v121
    %135 = vmatprep.subr.bf16.mxu0 0
    %136 = vmatpush1.bf16.msra.mxu0 %v120
    %137 = vmatprep.subr.bf16.mxu0 0
    %138 = vmatpush1.bf16.msra.mxu0 %v119
    %139 = vmatprep.subr.bf16.mxu0 0
    %140 = vmatpush1.bf16.msra.mxu0 %v118
    %141 = vmatprep.subr.bf16.mxu0 0
    %142 = vmatpush1.bf16.msra.mxu0 %v117
    %143 = vmatprep.subr.bf16.mxu0 0
    %144 = vmatpush1.bf16.msra.mxu0 %v116
    %145 = vmatprep.subr.bf16.mxu0 0
    %146 = vmatpush1.bf16.msra.mxu0 %v115
    %147 = vmatprep.subr.bf16.mxu0 0
    %148 = vmatpush2.bf16.msra.mxu0 0
    %149 = vmatprep.subr.bf16.mxu0 0
    %150 = vmatpush2.bf16.msra.mxu0 0
    %151 = vmatprep.subr.bf16.mxu0 0
    %152 = vmatpush2.bf16.msra.mxu0 0
    %153 = vmatprep.subr.bf16.mxu0 0
    %154 = vmatpush2.bf16.msra.mxu0 0
    %155 = vmatprep.subr.bf16.mxu0 0
    %156 = vmatpush2.bf16.msra.mxu0 0
    %157 = vmatprep.subr.bf16.mxu0 0
    %158 = vmatpush2.bf16.msra.mxu0 0
    %159 = vmatprep.subr.bf16.mxu0 0
    %160 = vmatpush2.bf16.msra.mxu0 0
    %161 = vmatprep.subr.bf16.mxu0 0
    %162 = vmatpush2.bf16.msra.mxu0 0
    %163 = vmatprep.mubr.bf16.mxu0 0
    %164 = vmatmul.mubr.bf16.gmra.mxu0 %v81
    %v165 = vpop.f32.mrf.mxu0
    %v166 = vadd.f32 0.0, %v165
    %v167 = vpop.f32.mrf.mxu0
    %v168 = vpop.f32.mrf.mxu0
    %v169 = vadd.f32 0.0, %v168
    %v170 = vpop.f32.mrf.mxu0
    %171 = vdwg.mxu0
    %v172 = vadd.f32 %v57, %v166
    %v173 = vadd.f32 %v58, %v169
    %174 = vst [vmem:[#allocation2] sm:$0xff] %v172
    %175 = vst [vmem:[#allocation2 + $0x8] sm:$0xff] %v173
    // Predicated region
    $region26: #{tpu_custom_call.1} parent=1 // pred_check
      %p176 = pneg %p44
    $region27: #{tpu_custom_call.1} parent=1 // pred_check_branch
      %178 = sbr.rel (%p176) target = $region29
    $region28: #{tpu_custom_call.1} parent=1 // pred_region
      %v179 = vld [vmem:[#allocation2] sm:$0xff]
      %v180 = vld [vmem:[#allocation2 + $0x8] sm:$0xff]
      %181 = vst [vmem:[#allocation8] sm:$0xff] %v179
      %182 = vst [vmem:[#allocation8 + $0x8] sm:$0xff] %v180
    $region29: #{tpu_custom_call.1} parent=1 // pred_fallthru
      _
    // Predicated region
    $region30: #{tpu_custom_call.1} parent=1 // pred_check
      _
    $region31: #{tpu_custom_call.1} parent=1 // pred_check_branch
      %184 = sbr.rel (0) target = $region33
    $region32: #{tpu_custom_call.1} parent=1 // pred_region
      %s186 = ssub.s32 256, 256
      %187 = vsyncadd [#allocation5], %s186
      %s188 = sshll.u32 [#allocation8], 4
      %s189 = int_to_ptr.vmem [resolvable:$true] %s188
      %194 = dma.vmem_to_hbm [thread:$0]  %s189, 256, %s3, [#allocation5], 128, 128, 8
    $region33: #{tpu_custom_call.1} parent=1 // pred_fallthru
      _
    // Predicated region
    $region34: #{tpu_custom_call.1} parent=1 // pred_check
      _
    $region35: #{tpu_custom_call.1} parent=1 // pred_check_branch
      %196 = sbr.rel (0) target = $region37
    $region36: #{tpu_custom_call.1} parent=1 // pred_region
      %197 = dma.done [#allocation5], 256
    $region37: #{tpu_custom_call.1} parent=1 // pred_fallthru
      _
    %198 = vsyncpa [#allocation4], 1
    %199 = vsyncpa [#allocation7], 1
    %200 = vsyncpa [#allocation5], 1

</llo_original>
